<compile_context>
chip_gen: v7x
topology: tpu7x:2x2x1
jax: 0.10.0
libtpu: 0.0.40
codegen_flags: <defaults>
</compile_context>

<pallas_src>
import functools

import jax
import jax.numpy as jnp
from jax.experimental import pallas as pl
from jax.experimental.pallas import tpu as pltpu


def _round_up(x, m):
    return (x + m - 1) // m * m


def _round_down(x, m):
    return (x // m) * m


def _reghead_kernel(x_ref, w1_ref, b1_ref, w2_ref, b2_ref, o_ref, *, inv_hw):
    # x_ref : (tb, C, HW)  row tile of activations, spatial flattened onto lanes
    # w1_ref: (C,  Fp)     b1_ref: (1, Fp)      (Fp = features padded to 128)
    # w2_ref: (Fp, Op)     b2_ref: (1, Op)      (Op = 6 padded to 128)
    # o_ref : (tb, Op)     written in x.dtype (lane-dense, unmasked stores)

    # AdaptiveAvgPool2d((1,1)) + Flatten: mean over the spatial (lane) axis, f32 accumulation.
    pooled = jnp.sum(x_ref[...], axis=-1, dtype=jnp.float32) * inv_hw      # (tb, C) f32

    # fc1 + ReLU: native-dtype operands (bf16 weights), f32 accumulation on the MXU.
    h = jnp.dot(pooled.astype(w1_ref.dtype), w1_ref[...],
                preferred_element_type=jnp.float32)
    h = jnp.maximum(h + b1_ref[...], 0.0)

    # fc2.
    y = jnp.dot(h.astype(w2_ref.dtype), w2_ref[...],
                preferred_element_type=jnp.float32) + b2_ref[...]

    o_ref[...] = y.astype(o_ref.dtype)


def prepare_reghead_params(w1, b1, w2, b2, *, param_dtype=jnp.bfloat16):
    """Transpose + lane-pad PyTorch-layout params ONCE (parameter-prep time, not per call).

    w1: (features, in_features)   b1: (features,)
    w2: (out,      features)      b2: (out,)
    Weights are stored in `param_dtype` (bf16 default: halves weight DMA/VMEM; the MXU still
    accumulates in f32). Biases stay f32.
    """
    features, c_in = w1.shape
    out = w2.shape[0]
    fp = _round_up(features, 128)
    op = _round_up(out, 128)

    if param_dtype is not None:
        w1 = w1.astype(param_dtype)
        w2 = w2.astype(param_dtype)

    w1t = jnp.zeros((c_in, fp), w1.dtype).at[:, :features].set(w1.T)
    w2t = jnp.zeros((fp, op), w2.dtype).at[:features, :out].set(w2.T)
    b1p = jnp.zeros((1, fp), jnp.float32).at[0, :features].set(b1.astype(jnp.float32))
    b2p = jnp.zeros((1, op), jnp.float32).at[0, :out].set(b2.astype(jnp.float32))
    return w1t, b1p, w2t, b2p, out


def _vmem_budget_bytes():
    """Per-TensorCore VMEM budget: physical capacity minus >=8 MiB compiler-scratch headroom."""
    try:
        cap = int(pltpu.get_tpu_info().vmem_capacity_bytes)
    except Exception:
        cap = 64 * 1024 * 1024          # conservative fallback (v7x: 64 MiB per TC)
    headroom = max(8 * 1024 * 1024, cap // 8)
    return int(min(cap - headroom, 110 * 1024 * 1024))   # v5e/v6e land at ~110 MiB, v7x at ~56 MiB


def reghead_pallas(x, w1t, b1p, w2t, b2p, out_features):
    """x: (B, C, H, W) with C == 2*channels. Params from prepare_reghead_params."""
    B, C, H, W = x.shape
    HW = H * W
    c_in, fp = w1t.shape
    op = w2t.shape[1]
    assert c_in == C, "input channel count must equal 2*channels of the RegHead"

    x3 = x.reshape(B, C, HW)            # free view -- no HBM pad copy of x

    sub = 16 if x.dtype == jnp.bfloat16 else 8
    x_item = jnp.dtype(x.dtype).itemsize
    w_item = jnp.dtype(w1t.dtype).itemsize

    row_bytes = C * HW * x_item
    # Constant-index weight/bias blocks are fetched once but the default pipeline keeps two
    # buffers, so budget 2x their size.
    # TODO(synk): pipeline_mode=pl.Buffered(1) on the weight specs halves this residency if a
    # very large C/features ever makes weights (not the activation tile) the VMEM bottleneck.
    w_bytes = 2 * ((c_in * fp + fp * op) * w_item + (fp + op) * 4)
    per_row = 2 * (row_bytes + op * x_item)        # double-buffered activation tile + output tile

    budget = _vmem_budget_bytes()
    tb_vmem = max((budget - w_bytes) // per_row, sub)          # fits the per-TC VMEM budget
    tb_target = max((8 * 1024 * 1024) // row_bytes, sub)       # ~8 MiB/buffer: roofline plateau
    tb_twostep = _round_up(pl.cdiv(B, 2), sub)                 # >=2 steps so v7x's 2 TCs both stream
    tb = min(tb_vmem, tb_target, _round_up(B, sub), tb_twostep)
    tb = max(_round_down(tb, sub), sub)

    # Ragged tail handled by the pipeline: last input block's DMA is clamped to the valid rows,
    # out-of-bounds output rows are dropped on writeback -- no batch padding needed.
    grid = (pl.cdiv(B, tb),)

    vmem_limit = int(min(max(w_bytes + tb * per_row + (2 << 20), 32 * 1024 * 1024), budget))

    kernel = functools.partial(_reghead_kernel, inv_hw=1.0 / HW)

    out = pl.pallas_call(
        kernel,
        out_shape=jax.ShapeDtypeStruct((B, op), x.dtype),
        grid_spec=pltpu.PrefetchScalarGridSpec(
            num_scalar_prefetch=0,
            grid=grid,
            in_specs=[
                # Activation row tile (block index varies with i -> pipelined DMA).
                pl.BlockSpec((tb, C, HW), lambda i: (i, 0, 0)),
                # Weights / biases: constant block index -> fetched once, VMEM-resident.
                pl.BlockSpec((c_in, fp), lambda i: (0, 0)),
                pl.BlockSpec((1, fp), lambda i: (0, 0)),
                pl.BlockSpec((fp, op), lambda i: (0, 0)),
                pl.BlockSpec((1, op), lambda i: (0, 0)),
            ],
            # Lane-dense output slab (op is a multiple of 128) -> unmasked vst.
            out_specs=pl.BlockSpec((tb, op), lambda i: (i, 0)),
        ),
        compiler_params=pltpu.CompilerParams(
            dimension_semantics=("parallel",),
            vmem_limit_bytes=vmem_limit,
        ),
    )(x3, w1t, b1p, w2t, b2p)

    return out[:, :out_features]


def _reference_reghead(x, w1, b1, w2, b2):
    B, C, H, W = x.shape
    pooled = jnp.mean(x.reshape(B, C, H * W), axis=-1)
    h = jnp.maximum(pooled @ w1.T + b1, 0.0)
    return h @ w2.T + b2


if __name__ == "__main__":
    # RegHead(channels=4): input must carry 2*channels feature maps.
    B = 2
    CHANNELS = 4
    C_IN = 2 * CHANNELS
    H = W = 16
    FEATURES = 100
    OUT = 6

    key = jax.random.PRNGKey(0)
    kx, kw1, kb1, kw2, kb2 = jax.random.split(key, 5)

    x = jax.random.normal(kx, (B, C_IN, H, W), dtype=jnp.float32)
    # nn.Linear-style init (weight layout [out, in]).
    lim1 = 1.0 / (C_IN ** 0.5)
    lim2 = 1.0 / (FEATURES ** 0.5)
    w1 = jax.random.uniform(kw1, (FEATURES, C_IN), minval=-lim1, maxval=lim1, dtype=jnp.float32)
    b1 = jax.random.uniform(kb1, (FEATURES,), minval=-lim1, maxval=lim1, dtype=jnp.float32)
    w2 = jax.random.uniform(kw2, (OUT, FEATURES), minval=-lim2, maxval=lim2, dtype=jnp.float32)
    b2 = jax.random.uniform(kb2, (OUT,), minval=-lim2, maxval=lim2, dtype=jnp.float32)

    # One-time parameter prep (transpose + lane padding + bf16 weights), outside the forward path.
    w1t, b1p, w2t, b2p, out_features = prepare_reghead_params(
        w1, b1, w2, b2, param_dtype=jnp.bfloat16)

    y = reghead_pallas(x, w1t, b1p, w2t, b2p, out_features)
    y = jax.block_until_ready(y)

    ref = _reference_reghead(x, w1, b1, w2, b2)
    assert y.shape == (B, OUT)
    # bf16 weights (f32 accumulation) -> slightly loosened tolerance vs the all-f32 reference.
    assert jnp.allclose(y, ref, atol=2e-2, rtol=2e-2), (
        f"mismatch vs reference: max abs err {jnp.max(jnp.abs(y - ref))}")

    print("KERNEL_OK")
</pallas_src>

<mosaic_0001>
module attributes {stable_mosaic.version = 11 : i64} {
  func.func @_reghead_kernel(%arg0: i32, %arg1: memref<8x8x256xf32, #tpu.memory_space<vmem>>, %arg2: memref<8x128xbf16, #tpu.memory_space<vmem>>, %arg3: memref<1x128xf32, #tpu.memory_space<vmem>>, %arg4: memref<128x128xbf16, #tpu.memory_space<vmem>>, %arg5: memref<1x128xf32, #tpu.memory_space<vmem>>, %arg6: memref<8x128xf32, #tpu.memory_space<vmem>>) attributes {dimension_semantics = [#tpu.dimension_semantics<parallel>], iteration_bounds = array<i64: 1>, scalar_prefetch = 0 : i64, scratch_operands = 0 : i64, tpu.core_type = #tpu.core_type<tc>, window_params = [{transform_indices = @transform_0, window_bounds = array<i64: 8, 8, 256>}, {pipeline_mode = #tpu.pipeline_mode<synchronous>, transform_indices = @transform_1, window_bounds = array<i64: 8, 128>}, {pipeline_mode = #tpu.pipeline_mode<synchronous>, transform_indices = @transform_2, window_bounds = array<i64: 1, 128>}, {pipeline_mode = #tpu.pipeline_mode<synchronous>, transform_indices = @transform_3, window_bounds = array<i64: 128, 128>}, {pipeline_mode = #tpu.pipeline_mode<synchronous>, transform_indices = @transform_4, window_bounds = array<i64: 1, 128>}, {transform_indices = @transform_5, window_bounds = array<i64: 8, 128>}]} {
    %c0 = arith.constant 0 : index
    %c0_0 = arith.constant 0 : index
    %c0_1 = arith.constant 0 : index
    %0 = vector.load %arg1[%c0, %c0_0, %c0_1] : memref<8x8x256xf32, #tpu.memory_space<vmem>>, vector<8x8x256xf32>
    %cst = arith.constant dense<0.000000e+00> : vector<8x8xf32>
    %1 = vector.multi_reduction <add>, %0, %cst [2] : vector<8x8x256xf32> to vector<8x8xf32>
    %cst_2 = arith.constant 3.906250e-03 : f32
    %2 = vector.broadcast %cst_2 : f32 to vector<8x8xf32>
    %3 = arith.mulf %1, %2 : vector<8x8xf32>
    %4 = arith.truncf %3 : vector<8x8xf32> to vector<8x8xbf16>
    %c0_3 = arith.constant 0 : index
    %c0_4 = arith.constant 0 : index
    %5 = vector.load %arg2[%c0_3, %c0_4] : memref<8x128xbf16, #tpu.memory_space<vmem>>, vector<8x128xbf16>
    %cst_5 = arith.constant dense<0.000000e+00> : vector<8x128xf32>
    %6 = tpu.matmul %4, %5, %cst_5 {dimension_numbers = #tpu.dot_dimension_numbers<[1], [0], [0], [1], [0, 0, 1, 1], [], []>} : vector<8x8xbf16>, vector<8x128xbf16>, vector<8x128xf32> -> vector<8x128xf32>
    %c0_6 = arith.constant 0 : index
    %c0_7 = arith.constant 0 : index
    %7 = vector.load %arg3[%c0_6, %c0_7] : memref<1x128xf32, #tpu.memory_space<vmem>>, vector<1x128xf32>
    %8 = vector.broadcast %7 : vector<1x128xf32> to vector<8x128xf32>
    %9 = arith.addf %6, %8 : vector<8x128xf32>
    %cst_8 = arith.constant 0.000000e+00 : f32
    %10 = vector.broadcast %cst_8 : f32 to vector<8x128xf32>
    %11 = arith.maximumf %9, %10 : vector<8x128xf32>
    %12 = arith.truncf %11 : vector<8x128xf32> to vector<8x128xbf16>
    %c0_9 = arith.constant 0 : index
    %c0_10 = arith.constant 0 : index
    %13 = vector.load %arg4[%c0_9, %c0_10] : memref<128x128xbf16, #tpu.memory_space<vmem>>, vector<128x128xbf16>
    %cst_11 = arith.constant dense<0.000000e+00> : vector<8x128xf32>
    %14 = tpu.matmul %12, %13, %cst_11 {dimension_numbers = #tpu.dot_dimension_numbers<[1], [0], [0], [1], [0, 0, 1, 1], [], []>} : vector<8x128xbf16>, vector<128x128xbf16>, vector<8x128xf32> -> vector<8x128xf32>
    %c0_12 = arith.constant 0 : index
    %c0_13 = arith.constant 0 : index
    %15 = vector.load %arg5[%c0_12, %c0_13] : memref<1x128xf32, #tpu.memory_space<vmem>>, vector<1x128xf32>
    %16 = vector.broadcast %15 : vector<1x128xf32> to vector<8x128xf32>
    %17 = arith.addf %14, %16 : vector<8x128xf32>
    %c0_14 = arith.constant 0 : index
    %c0_15 = arith.constant 0 : index
    %18 = vector.load %arg6[%c0_14, %c0_15] : memref<8x128xf32, #tpu.memory_space<vmem>>, vector<8x128xf32>
    tpu.vector_store %arg6[%c0_14, %c0_15], %17 {strides = array<i32>} : memref<8x128xf32, #tpu.memory_space<vmem>>, vector<8x128xf32>,
    return
  }
  func.func @transform_0(%arg0: i32) -> (i32, i32, i32) {
    %c0_i32 = arith.constant 0 : i32
    %c0_i32_0 = arith.constant 0 : i32
    %c0_i32_1 = arith.constant 0 : i32
    return %arg0, %c0_i32, %c0_i32_0 : i32, i32, i32
  }
  func.func @transform_1(%arg0: i32) -> (i32, i32) {
    %c0_i32 = arith.constant 0 : i32
    %c0_i32_0 = arith.constant 0 : i32
    %c0_i32_1 = arith.constant 0 : i32
    return %c0_i32, %c0_i32_0 : i32, i32
  }
  func.func @transform_2(%arg0: i32) -> (i32, i32) {
    %c0_i32 = arith.constant 0 : i32
    %c0_i32_0 = arith.constant 0 : i32
    %c0_i32_1 = arith.constant 0 : i32
    return %c0_i32, %c0_i32_0 : i32, i32
  }
  func.func @transform_3(%arg0: i32) -> (i32, i32) {
    %c0_i32 = arith.constant 0 : i32
    %c0_i32_0 = arith.constant 0 : i32
    %c0_i32_1 = arith.constant 0 : i32
    return %c0_i32, %c0_i32_0 : i32, i32
  }
  func.func @transform_4(%arg0: i32) -> (i32, i32) {
    %c0_i32 = arith.constant 0 : i32
    %c0_i32_0 = arith.constant 0 : i32
    %c0_i32_1 = arith.constant 0 : i32
    return %c0_i32, %c0_i32_0 : i32, i32
  }
  func.func @transform_5(%arg0: i32) -> (i32, i32) {
    %c0_i32 = arith.constant 0 : i32
    %c0_i32_0 = arith.constant 0 : i32
    return %arg0, %c0_i32 : i32, i32
  }
}

</mosaic_0001>

<llo_original>
// kernel: tpu_custom_call.1
$region0: #{tpu_custom_call.1}
  #allocation0 [shape = 'u32[]', space=smem, size = 0x4, offset = 0x4, fixed_abs, tag = 'smem constant byte address 0x4 - core index']
  #allocation1 [shape = 'u32[144,128]{1,0:T(1,128)}', space=vmem, size = 0x12000, scoped, tag = 'internal scratch']
  %s0 = inlined_call_operand.hbm [shape: f32[2,8,256], index: 0, kind: input, shape index: {}]
  %s1 = inlined_call_operand.hbm [shape: bf16[8,128], index: 1, kind: input, shape index: {}]
  %s2 = inlined_call_operand.vmem [shape: f32[1,128], index: 2, kind: input, shape index: {}]
  %s3 = inlined_call_operand.hbm [shape: bf16[128,128], index: 3, kind: input, shape index: {}]
  %s4 = inlined_call_operand.vmem [shape: f32[1,128], index: 4, kind: input, shape index: {}]
  %s5 = inlined_call_operand.hbm [shape: f32[2,128], index: 5, kind: output, shape index: {}]
  %s6 = sld [smem:[#allocation0]]
  $region42: #{tpu_custom_call.1} parent=0
    _
  %s8 = ssub.s32 1, %s6
  %s9 = scalar_select 0, %s8, %s6
  $region1: #{tpu_custom_call.1} parent=0
    #allocation2 [shape = 'u8[65536]{0}', space=vmem, size = 0x10000, scoped, tag = 'input window, operand 0, single buffered']
    #allocation3 [shape = 's32[1]{0}', space=sflag, size = 0x4, scoped, tag = 'scoped memory for tpu_custom_call.1']
    #allocation4 [shape = 's32[1]{0}', space=sflag, size = 0x4, scoped, tag = 'scoped memory for tpu_custom_call.1']
    #allocation5 [shape = 'u8[2048]{0}', space=vmem, size = 0x800, scoped, tag = 'input window, operand 1, single buffered']
    #allocation6 [shape = 's32[1]{0}', space=sflag, size = 0x4, scoped, tag = 'scoped memory for tpu_custom_call.1']
    #allocation7 [shape = 'u8[32768]{0}', space=vmem, size = 0x8000, scoped, tag = 'input window, operand 3, single buffered']
    #allocation8 [shape = 'u8[4096]{0}', space=vmem, size = 0x1000, scoped, tag = 'output window, operand 0, single buffered']
    %10 = vsyncpa [#allocation3], 0
    %11 = vsyncpa [#allocation6], 0
    %12 = vsyncpa [#allocation4], 0
    // Predicated region
    $region2: #{tpu_custom_call.1} parent=1 // pred_check
      _
    $region3: #{tpu_custom_call.1} parent=1 // pred_check_branch
      %14 = sbr.rel (0) target = $region5
    $region4: #{tpu_custom_call.1} parent=1 // pred_region
      %s16 = ssub.s32 2048, 512
      %17 = vsyncadd [#allocation3], %s16
      %s18 = sshll.u32 [#allocation2], 4
      %s19 = int_to_ptr.vmem [resolvable:$true] %s18
      %24 = dma.hbm_to_vmem [thread:$0]  %s0, 512, %s19, [#allocation3], 256, 256, 16
    $region5: #{tpu_custom_call.1} parent=1 // pred_fallthru
      _
    // Predicated region
    $region6: #{tpu_custom_call.1} parent=1 // pred_check
      _
    $region7: #{tpu_custom_call.1} parent=1 // pred_check_branch
      %26 = sbr.rel (0) target = $region9
    $region8: #{tpu_custom_call.1} parent=1 // pred_region
      %s28 = ssub.s32 64, 64
      %29 = vsyncadd [#allocation6], %s28
      %s31 = sshll.u32 [#allocation5], 4
      %s32 = int_to_ptr.vmem [resolvable:$true] %s31
      %34 = dma.hbm_to_vmem [thread:$0]  %s1, 64, %s32, [#allocation6]
    $region9: #{tpu_custom_call.1} parent=1 // pred_fallthru
      _
    // Predicated region
    $region10: #{tpu_custom_call.1} parent=1 // pred_check
      _
    $region11: #{tpu_custom_call.1} parent=1 // pred_check_branch
      %36 = sbr.rel (0) target = $region13
    $region12: #{tpu_custom_call.1} parent=1 // pred_region
      _
    $region13: #{tpu_custom_call.1} parent=1 // pred_fallthru
      _
    // Predicated region
    $region14: #{tpu_custom_call.1} parent=1 // pred_check
      _
    $region15: #{tpu_custom_call.1} parent=1 // pred_check_branch
      %38 = sbr.rel (0) target = $region17
    $region16: #{tpu_custom_call.1} parent=1 // pred_region
      %s40 = ssub.s32 1024, 1024
      %41 = vsyncadd [#allocation6], %s40
      %s42 = sshll.u32 [#allocation7], 4
      %s43 = int_to_ptr.vmem [resolvable:$true] %s42
      %48 = dma.hbm_to_vmem [thread:$0]  %s3, 1024, %s43, [#allocation6], 64, 64, 4
    $region17: #{tpu_custom_call.1} parent=1 // pred_fallthru
      _
    // Predicated region
    $region18: #{tpu_custom_call.1} parent=1 // pred_check
      _
    $region19: #{tpu_custom_call.1} parent=1 // pred_check_branch
      %50 = sbr.rel (0) target = $region21
    $region20: #{tpu_custom_call.1} parent=1 // pred_region
      _
    $region21: #{tpu_custom_call.1} parent=1 // pred_fallthru
      _
    // Predicated region
    $region22: #{tpu_custom_call.1} parent=1 // pred_check
      _
    $region23: #{tpu_custom_call.1} parent=1 // pred_check_branch
      %52 = sbr.rel (0) target = $region25
    $region24: #{tpu_custom_call.1} parent=1 // pred_region
      %53 = dma.done [#allocation3], 2048
    $region25: #{tpu_custom_call.1} parent=1 // pred_fallthru
      _
    // Predicated region
    $region26: #{tpu_custom_call.1} parent=1 // pred_check
      _
    $region27: #{tpu_custom_call.1} parent=1 // pred_check_branch
      %55 = sbr.rel (0) target = $region29
    $region28: #{tpu_custom_call.1} parent=1 // pred_region
      %56 = dma.done [#allocation6], 64
    $region29: #{tpu_custom_call.1} parent=1 // pred_fallthru
      _
    // Predicated region
    $region30: #{tpu_custom_call.1} parent=1 // pred_check
      _
    $region31: #{tpu_custom_call.1} parent=1 // pred_check_branch
      %58 = sbr.rel (0) target = $region33
    $region32: #{tpu_custom_call.1} parent=1 // pred_region
      %59 = dma.done [#allocation6], 1024
    $region33: #{tpu_custom_call.1} parent=1 // pred_fallthru
      _
    %v61 = vld [vmem:[#allocation2] sm:$0xff]
    %v62 = vld [vmem:[#allocation2 + $0x8] sm:$0xff]
    %v63 = vld [vmem:[#allocation2 + $0x10] sm:$0xff]
    %v64 = vld [vmem:[#allocation2 + $0x18] sm:$0xff]
    %v65 = vld [vmem:[#allocation2 + $0x20] sm:$0xff]
    %v66 = vld [vmem:[#allocation2 + $0x28] sm:$0xff]
    %v67 = vld [vmem:[#allocation2 + $0x30] sm:$0xff]
    %v68 = vld [vmem:[#allocation2 + $0x38] sm:$0xff]
    %v69 = vld [vmem:[#allocation2 + $0x40] sm:$0xff]
    %v70 = vld [vmem:[#allocation2 + $0x48] sm:$0xff]
    %v71 = vld [vmem:[#allocation2 + $0x50] sm:$0xff]
    %v72 = vld [vmem:[#allocation2 + $0x58] sm:$0xff]
    %v73 = vld [vmem:[#allocation2 + $0x60] sm:$0xff]
    %v74 = vld [vmem:[#allocation2 + $0x68] sm:$0xff]
    %v75 = vld [vmem:[#allocation2 + $0x70] sm:$0xff]
    %v76 = vld [vmem:[#allocation2 + $0x78] sm:$0xff]
    %v77 = vadd.f32 %v61, %v62
    %78 = vadd.xlane.f32.xlu0 %v77
    %v79 = vpop.xlane.xlu0 %78
    %v80 = vadd.f32 %v63, %v64
    %81 = vadd.xlane.f32.xlu0 %v80
    %v82 = vpop.xlane.xlu0 %81
    %v83 = vadd.f32 %v65, %v66
    %84 = vadd.xlane.f32.xlu0 %v83
    %v85 = vpop.xlane.xlu0 %84
    %v86 = vadd.f32 %v67, %v68
    %87 = vadd.xlane.f32.xlu0 %v86
    %v88 = vpop.xlane.xlu0 %87
    %v89 = vadd.f32 %v69, %v70
    %90 = vadd.xlane.f32.xlu0 %v89
    %v91 = vpop.xlane.xlu0 %90
    %v92 = vadd.f32 %v71, %v72
    %93 = vadd.xlane.f32.xlu0 %v92
    %v94 = vpop.xlane.xlu0 %93
    %v95 = vadd.f32 %v73, %v74
    %96 = vadd.xlane.f32.xlu0 %v95
    %v97 = vpop.xlane.xlu0 %96
    %v98 = vadd.f32 %v75, %v76
    %99 = vadd.xlane.f32.xlu0 %v98
    %v100 = vpop.xlane.xlu0 %99
    %v101 = vmul.f32 %v79, 0.00390625
    %v102 = vmul.f32 %v82, 0.00390625
    %v103 = vmul.f32 %v85, 0.00390625
    %v104 = vmul.f32 %v88, 0.00390625
    %v105 = vmul.f32 %v91, 0.00390625
    %v106 = vmul.f32 %v94, 0.00390625
    %v107 = vmul.f32 %v97, 0.00390625
    %v108 = vmul.f32 %v100, 0.00390625
    %v109 = vpack.c.bf16 %v101, %v101
    %v110 = vpack.c.bf16 %v102, %v102
    %v111 = vpack.c.bf16 %v103, %v103
    %v112 = vpack.c.bf16 %v104, %v104
    %v113 = vpack.c.bf16 %v105, %v105
    %v114 = vpack.c.bf16 %v106, %v106
    %v115 = vpack.c.bf16 %v107, %v107
    %v116 = vpack.c.bf16 %v108, %v108
    %v117 = vld [vmem:[#allocation5] sm:$0xf]
    %v118 = vld [vmem:[%s2] sm:$0x1]
    %v120 = vlaneseq
    %v121 = vshrl.u32 %v120, 7
    %v122 = vsub.s32 0, %v121
    %v123 = vrot.slane %v118, %v122
    %v133 = vunpack.c.l.b16 %v109
    %v134 = vunpack.c.l.b16 %v110
    %v135 = vunpack.c.l.b16 %v111
    %v136 = vunpack.c.l.b16 %v112
    %v137 = vunpack.c.l.b16 %v113
    %v138 = vunpack.c.l.b16 %v114
    %v139 = vunpack.c.l.b16 %v115
    %v140 = vunpack.c.l.b16 %v116
    %v141 = vlaneseq
    %v142 = vand.u32 %v141, 127
    %v143 = vlaneseq
    %v144 = vshrl.u32 %v143, 7
    %v145 = vsub.s32 %v142, %v144
    %v146 = vrot.slane %v133, %v145
    %v147 = vlaneseq
    %v148 = vshrl.u32 %v147, 7
    %v149 = vsub.s32 %v142, %v148
    %v150 = vrot.slane %v134, %v149
    %v151 = vlaneseq
    %v152 = vshrl.u32 %v151, 7
    %v153 = vsub.s32 %v142, %v152
    %v154 = vrot.slane %v135, %v153
    %v155 = vlaneseq
    %v156 = vshrl.u32 %v155, 7
    %v157 = vsub.s32 %v142, %v156
    %v158 = vrot.slane %v136, %v157
    %v159 = vlaneseq
    %v160 = vshrl.u32 %v159, 7
    %v161 = vsub.s32 %v142, %v160
    %v162 = vrot.slane %v137, %v161
    %v163 = vlaneseq
    %v164 = vshrl.u32 %v163, 7
    %v165 = vsub.s32 %v142, %v164
    %v166 = vrot.slane %v138, %v165
    %v167 = vlaneseq
    %v168 = vshrl.u32 %v167, 7
    %v169 = vsub.s32 %v142, %v168
    %v170 = vrot.slane %v139, %v169
    %v171 = vlaneseq
    %v172 = vshrl.u32 %v171, 7
    %v173 = vsub.s32 %v142, %v172
    %v174 = vrot.slane %v140, %v173
    %vm175 = vcmask 1041409
    %v176 = vsel %vm175, %v150, %v146
    %vm177 = vcmask 1042434
    %v178 = vsel %vm177, %v154, %v176
    %vm179 = vcmask 1043459
    %v180 = vsel %vm179, %v158, %v178
    %vm181 = vcmask 1044484
    %v182 = vsel %vm181, %v162, %v180
    %vm183 = vcmask 1045509
    %v184 = vsel %vm183, %v166, %v182
    %vm185 = vcmask 1046534
    %v186 = vsel %vm185, %v170, %v184
    %vm187 = vcmask 1047559
    %v188 = vsel %vm187, %v174, %v186
    %v189 = vpack.c.b16 %v188, %v188
    %vm190 = vcmask 64512
    %v192 = vsel %vm190, %v189, 0
    %vm194 = vcmask 1043456
    %v196 = vsel %vm194, %v117, 0
    %198 = vmatprep.subr.bf16.mxu0 0
    %199 = vmatpush1.bf16.msra.mxu0 %v196
    %200 = vmatprep.subr.bf16.mxu0 0
    %201 = vmatpush1.bf16.msra.mxu0 0
    %202 = vmatprep.subr.bf16.mxu0 0
    %203 = vmatpush1.bf16.msra.mxu0 0
    %204 = vmatprep.subr.bf16.mxu0 0
    %205 = vmatpush1.bf16.msra.mxu0 0
    %206 = vmatprep.subr.bf16.mxu0 0
    %207 = vmatpush1.bf16.msra.mxu0 0
    %208 = vmatprep.subr.bf16.mxu0 0
    %209 = vmatpush1.bf16.msra.mxu0 0
    %210 = vmatprep.subr.bf16.mxu0 0
    %211 = vmatpush1.bf16.msra.mxu0 0
    %212 = vmatprep.subr.bf16.mxu0 0
    %213 = vmatpush1.bf16.msra.mxu0 0
    %214 = vmatprep.subr.bf16.mxu0 0
    %215 = vmatpush1.bf16.msra.mxu0 0
    %216 = vmatprep.subr.bf16.mxu0 0
    %217 = vmatpush1.bf16.msra.mxu0 0
    %218 = vmatprep.subr.bf16.mxu0 0
    %219 = vmatpush1.bf16.msra.mxu0 0
    %220 = vmatprep.subr.bf16.mxu0 0
    %221 = vmatpush1.bf16.msra.mxu0 0
    %222 = vmatprep.subr.bf16.mxu0 0
    %223 = vmatpush1.bf16.msra.mxu0 0
    %224 = vmatprep.subr.bf16.mxu0 0
    %225 = vmatpush1.bf16.msra.mxu0 0
    %226 = vmatprep.subr.bf16.mxu0 0
    %227 = vmatpush1.bf16.msra.mxu0 0
    %228 = vmatprep.subr.bf16.mxu0 0
    %229 = vmatpush1.bf16.msra.mxu0 0
    %230 = vmatprep.mubr.bf16.mxu0 0
    %231 = vmatmul.mubr.bf16.gmra.mrb[0].mxu0 %v192
    %v232 = vpop.f32.mrb[0].mxu0
    %v233 = vadd.f32 %v123, %v232
    %v234 = vpop.f32.mrb[0].mxu0
    %v235 = vpop.f32.mrb[0].mxu0
    %v236 = vpop.f32.mrb[0].mxu0
    %237 = vdwg.mxu0
    %v238 = vmax.f32 %v233, 0.0
    %v239 = vpack.c.bf16 %v238, %v238
    %v240 = vld [vmem:[#allocation7] sm:$0xf]
    %v241 = vld [vmem:[#allocation7 + $0x4] sm:$0xf]
    %v242 = vld [vmem:[#allocation7 + $0x8] sm:$0xf]
    %v243 = vld [vmem:[#allocation7 + $0xc] sm:$0xf]
    %v244 = vld [vmem:[#allocation7 + $0x10] sm:$0xf]
    %v245 = vld [vmem:[#allocation7 + $0x14] sm:$0xf]
    %v246 = vld [vmem:[#allocation7 + $0x18] sm:$0xf]
    %v247 = vld [vmem:[#allocation7 + $0x1c] sm:$0xf]
    %v248 = vld [vmem:[#allocation7 + $0x20] sm:$0xf]
    %v249 = vld [vmem:[#allocation7 + $0x24] sm:$0xf]
    %v250 = vld [vmem:[#allocation7 + $0x28] sm:$0xf]
    %v251 = vld [vmem:[#allocation7 + $0x2c] sm:$0xf]
    %v252 = vld [vmem:[#allocation7 + $0x30] sm:$0xf]
    %v253 = vld [vmem:[#allocation7 + $0x34] sm:$0xf]
    %v254 = vld [vmem:[#allocation7 + $0x38] sm:$0xf]
    %v255 = vld [vmem:[#allocation7 + $0x3c] sm:$0xf]
    %v256 = vld [vmem:[%s4] sm:$0x1]
    %v258 = vlaneseq
    %v259 = vshrl.u32 %v258, 7
    %v260 = vsub.s32 0, %v259
    %v261 = vrot.slane %v256, %v260
    %v279 = vunpack.c.l.b16 %v240
    %v280 = vunpack.c.l.b16 %v241
    %v281 = vunpack.c.l.b16 %v242
    %v282 = vunpack.c.l.b16 %v243
    %v283 = vunpack.c.l.b16 %v244
    %v284 = vunpack.c.l.b16 %v245
    %v285 = vunpack.c.l.b16 %v246
    %v286 = vunpack.c.l.b16 %v247
    %v287 = vunpack.c.l.b16 %v248
    %v288 = vunpack.c.l.b16 %v249
    %v289 = vunpack.c.l.b16 %v250
    %v290 = vunpack.c.l.b16 %v251
    %v291 = vunpack.c.l.b16 %v252
    %v292 = vunpack.c.l.b16 %v253
    %v293 = vunpack.c.l.b16 %v254
    %v294 = vunpack.c.l.b16 %v255
    %v295 = vpack.c.b16 %v280, %v279
    %v296 = vpack.c.b16 %v282, %v281
    %v297 = vpack.c.b16 %v284, %v283
    %v298 = vpack.c.b16 %v286, %v285
    %v299 = vpack.c.b16 %v288, %v287
    %v300 = vpack.c.b16 %v290, %v289
    %v301 = vpack.c.b16 %v292, %v291
    %v302 = vpack.c.b16 %v294, %v293
    %311 = vmatprep.subr.bf16.mxu0 0
    %312 = vmatpush1.bf16.msra.mxu0 %v295
    %313 = vmatprep.subr.bf16.mxu0 0
    %314 = vmatpush1.bf16.msra.mxu0 %v296
    %315 = vmatprep.subr.bf16.mxu0 0
    %316 = vmatpush1.bf16.msra.mxu0 %v297
    %317 = vmatprep.subr.bf16.mxu0 0
    %318 = vmatpush1.bf16.msra.mxu0 %v298
    %319 = vmatprep.subr.bf16.mxu0 0
    %320 = vmatpush1.bf16.msra.mxu0 %v299
    %321 = vmatprep.subr.bf16.mxu0 0
    %322 = vmatpush1.bf16.msra.mxu0 %v300
    %323 = vmatprep.subr.bf16.mxu0 0
    %324 = vmatpush1.bf16.msra.mxu0 %v301
    %325 = vmatprep.subr.bf16.mxu0 0
    %326 = vmatpush1.bf16.msra.mxu0 %v302
    %327 = vmatprep.subr.bf16.mxu0 0
    %328 = vmatpush1.bf16.msra.mxu0 0
    %329 = vmatprep.subr.bf16.mxu0 0
    %330 = vmatpush1.bf16.msra.mxu0 0
    %331 = vmatprep.subr.bf16.mxu0 0
    %332 = vmatpush1.bf16.msra.mxu0 0
    %333 = vmatprep.subr.bf16.mxu0 0
    %334 = vmatpush1.bf16.msra.mxu0 0
    %335 = vmatprep.subr.bf16.mxu0 0
    %336 = vmatpush1.bf16.msra.mxu0 0
    %337 = vmatprep.subr.bf16.mxu0 0
    %338 = vmatpush1.bf16.msra.mxu0 0
    %339 = vmatprep.subr.bf16.mxu0 0
    %340 = vmatpush1.bf16.msra.mxu0 0
    %341 = vmatprep.subr.bf16.mxu0 0
    %342 = vmatpush1.bf16.msra.mxu0 0
    %343 = vmatprep.mubr.bf16.mxu0 0
    %344 = vmatmul.mubr.bf16.gmra.mrb[0].mxu0 %v239
    %v345 = vpop.f32.mrb[0].mxu0
    %v346 = vadd.f32 %v261, %v345
    %v347 = vpop.f32.mrb[0].mxu0
    %v348 = vpop.f32.mrb[0].mxu0
    %v349 = vpop.f32.mrb[0].mxu0
    %350 = vdwg.mxu0
    %351 = vst [vmem:[#allocation8] sm:$0xff] %v346
    // Predicated region
    $region34: #{tpu_custom_call.1} parent=1 // pred_check
      _
    $region35: #{tpu_custom_call.1} parent=1 // pred_check_branch
      %353 = sbr.rel (0) target = $region37
    $region36: #{tpu_custom_call.1} parent=1 // pred_region
      %s355 = ssub.s32 128, 32
      %356 = vsyncadd [#allocation4], %s355
      %s357 = sshll.u32 [#allocation8], 4
      %s358 = int_to_ptr.vmem [resolvable:$true] %s357
      %363 = dma.vmem_to_hbm [thread:$0]  %s358, 32, %s5, [#allocation4], 32, 32, 2
    $region37: #{tpu_custom_call.1} parent=1 // pred_fallthru
      _
    // Predicated region
    $region38: #{tpu_custom_call.1} parent=1 // pred_check
      _
    $region39: #{tpu_custom_call.1} parent=1 // pred_check_branch
      %365 = sbr.rel (0) target = $region41
    $region40: #{tpu_custom_call.1} parent=1 // pred_region
      %366 = dma.done [#allocation4], 128
    $region41: #{tpu_custom_call.1} parent=1 // pred_fallthru
      _
    %367 = vsyncpa [#allocation3], 1
    %368 = vsyncpa [#allocation6], 1
    %369 = vsyncpa [#allocation4], 1

</llo_original>
